<compile_context>
chip_gen: v6e
topology: v6e:2x2x1
jax: 0.10.0
libtpu: 0.0.40
codegen_flags: <defaults>
</compile_context>

<pallas_src>
import dataclasses
import functools

import jax
import jax.numpy as jnp
from jax.experimental import pallas as pl
from jax.experimental.pallas import tpu as pltpu


def _round_up(x, m):
    return (x + m - 1) // m * m


# ---------------------------------------------------------------------------
# Kernels
# ---------------------------------------------------------------------------
def _mlp_kernel_fp32_out(x_ref, w1_ref, w3_ref, w2_ref, o_ref):
    """fp32 output: accumulate directly into the resident output block."""
    f = pl.program_id(1)

    @pl.when(f == 0)
    def _():
        o_ref[...] = jnp.zeros_like(o_ref)

    h1 = jnp.dot(x_ref[...], w1_ref[...], preferred_element_type=jnp.float32)
    h3 = jnp.dot(x_ref[...], w3_ref[...], preferred_element_type=jnp.float32)
    gated = (h1 * jax.nn.sigmoid(h1)) * h3                      # SiLU(gate) * up
    o_ref[...] += jnp.dot(gated.astype(w2_ref.dtype), w2_ref[...],
                          preferred_element_type=jnp.float32)


def _mlp_kernel_acc_scratch(x_ref, w1_ref, w3_ref, w2_ref, o_ref, acc_ref):
    """Non-fp32 output: fp32 accumulator scratch, single cast at the end."""
    f = pl.program_id(1)

    @pl.when(f == 0)
    def _():
        acc_ref[...] = jnp.zeros_like(acc_ref)

    h1 = jnp.dot(x_ref[...], w1_ref[...], preferred_element_type=jnp.float32)
    h3 = jnp.dot(x_ref[...], w3_ref[...], preferred_element_type=jnp.float32)
    gated = (h1 * jax.nn.sigmoid(h1)) * h3
    acc_ref[...] += jnp.dot(gated.astype(w2_ref.dtype), w2_ref[...],
                            preferred_element_type=jnp.float32)

    @pl.when(f == pl.num_programs(1) - 1)
    def _():
        o_ref[...] = acc_ref[...].astype(o_ref.dtype)


# ---------------------------------------------------------------------------
# Chip detection + generation-aware tile planning
# ---------------------------------------------------------------------------
@dataclasses.dataclass(frozen=True)
class _ChipPlan:
    vmem_budget: int   # bytes the tile plan may consume (buffers + scratch)
    vmem_cap: int      # hard clamp for vmem_limit_bytes
    tm_target: int     # token-tile size target (roofline-driven)
    tf_max: int        # max ffn-tile size
    two_cores: bool    # dual TensorCore chip (needs >= 2 m-blocks)


def _detect_chip():
    kind = ""
    try:
        kind = jax.devices()[0].device_kind.lower()
    except Exception:
        pass
    if "v7" in kind or "7x" in kind:
        # v7x: 64 MiB VMEM / TC, 2 TCs, ~3.2 TB/s HBM, ~996 TF/s bf16 per TC.
        return _ChipPlan(40 << 20, 46 << 20, 448, 1024, True)
    if "v6" in kind:
        # v6e: 128 MiB VMEM, ~1.4 TB/s HBM, ~918 TF/s -> crossover ~650 flop/B.
        return _ChipPlan(88 << 20, 100 << 20, 512, 2048, False)
    if "v5" in kind and ("lite" in kind or "5e" in kind):
        # v5e: 128 MiB VMEM, ~0.82 TB/s, ~197 TF/s -> crossover ~240 flop/B.
        return _ChipPlan(88 << 20, 100 << 20, 256, 2048, False)
    # Unknown chip: v7x-safe VMEM budget, moderate tiles.
    return _ChipPlan(40 << 20, 46 << 20, 256, 1024, False)


def choose_plan(num_tokens, hidden_dim, ffn_dim, x_dtype, w_dtype, out_dtype=None):
    """Pick (tm, tf, vmem_limit_bytes) for the current chip and shapes."""
    if out_dtype is None:
        out_dtype = x_dtype
    chip = _detect_chip()
    x_isz = jnp.dtype(x_dtype).itemsize
    w_isz = jnp.dtype(w_dtype).itemsize
    o_isz = jnp.dtype(out_dtype).itemsize
    fp32_out = jnp.dtype(out_dtype) == jnp.dtype(jnp.float32)
    sub = 16 if x_isz == 2 else 8
    t = max(int(num_tokens), 1)

    # --- tm: as large as the chip's roofline wants (weight traffic per token
    # scales as 1/tm), but with >= 2 m-blocks on dual-TensorCore chips.
    tm = min(chip.tm_target, _round_up(t, sub))
    if chip.two_cores and t > sub:
        if -(-t // tm) < 2:
            tm = min(tm, max(sub, _round_up(-(-t // 2), sub)))

    def act_bytes(tm_):
        b = 2 * tm_ * hidden_dim * (x_isz + o_isz)     # double-buffered x + out
        if not fp32_out:
            b += tm_ * hidden_dim * 4                  # fp32 accumulator scratch
        return b

    def pick_tf(tm_):
        if ffn_dim % 128 != 0:
            return ffn_dim                             # unaligned F: single tile
        per_col = 2 * 3 * hidden_dim * w_isz           # dbl-buffered w1+w3+w2 / col
        tf_cap = (chip.vmem_budget - act_bytes(tm_)) // per_col
        tf_cap = min(int(tf_cap), chip.tf_max, ffn_dim)
        tf_ = (tf_cap // 128) * 128
        while tf_ >= 128 and ffn_dim % tf_ != 0:
            tf_ -= 128
        return tf_

    tf = pick_tf(tm)
    while tf < min(128, ffn_dim) and tm > sub:
        tm = max(sub, _round_up(tm // 2, sub))
        tf = pick_tf(tm)
    if tf < 128:
        tf = 128 if ffn_dim % 128 == 0 else ffn_dim

    need = act_bytes(tm) + 2 * 3 * hidden_dim * tf * w_isz
    vmem_limit = int(min(chip.vmem_cap, max(need + (2 << 20), 32 << 20)))
    return tm, tf, vmem_limit


# ---------------------------------------------------------------------------
# Load-time weight preparation (keep out of the per-call hot path)
# ---------------------------------------------------------------------------
def prepare_mixtral_weights(w1, w2, w3):
    """One-time weight layout prep (tile-plan agnostic).

    w1, w3: (F, H) -- nn.Linear(hidden, ffn).weight
    w2:     (H, F) -- nn.Linear(ffn, hidden).weight
    Returns (w1t, w3t, w2t) with shapes (H, F), (H, F), (F, H).
    """
    return jnp.asarray(w1).T, jnp.asarray(w3).T, jnp.asarray(w2).T


# ---------------------------------------------------------------------------
# Fused MLP call
# ---------------------------------------------------------------------------
@functools.partial(jax.jit, static_argnames=("tm", "tf", "vmem_limit"))
def _mixtral_mlp_impl(x, w1t, w3t, w2t, *, tm, tf, vmem_limit):
    T, H = x.shape
    F_dim = w2t.shape[0]

    # Pad token axis so ragged per-expert token counts are supported.
    # TODO(synk): handle the last partial m-block in-kernel (masked store)
    # instead of materializing a padded copy of x when T is large.
    T_pad = _round_up(T, tm)
    if T_pad != T:
        x = jnp.pad(x, ((0, T_pad - T), (0, 0)))

    grid = (T_pad // tm, F_dim // tf)

    out_dtype = x.dtype
    fp32_out = out_dtype == jnp.float32
    kernel = _mlp_kernel_fp32_out if fp32_out else _mlp_kernel_acc_scratch
    scratch = [] if fp32_out else [pltpu.VMEM((tm, H), jnp.float32)]

    # Advisory cost estimate; weight bytes are re-streamed once per m-block.
    w_isz = jnp.dtype(w1t.dtype).itemsize
    x_isz = jnp.dtype(x.dtype).itemsize
    o_isz = jnp.dtype(out_dtype).itemsize
    n_m = T_pad // tm
    cost = pl.CostEstimate(
        flops=2 * T_pad * H * F_dim * 3,
        transcendentals=T_pad * F_dim,
        bytes_accessed=(3 * H * F_dim * w_isz) * n_m + T_pad * H * (x_isz + o_isz),
    )

    # TODO(synk): in the small-tm decode regime, deepen the weight pipeline
    # (pipeline_mode=pl.Buffered(3) on the weight BlockSpecs) when it fits the
    # per-generation VMEM budget.
    out = pl.pallas_call(
        kernel,
        out_shape=jax.ShapeDtypeStruct((T_pad, H), out_dtype),
        grid_spec=pltpu.PrefetchScalarGridSpec(
            num_scalar_prefetch=0,
            grid=grid,
            in_specs=[
                pl.BlockSpec((tm, H), lambda m, f: (m, 0)),      # x
                pl.BlockSpec((H, tf), lambda m, f: (0, f)),      # w1^T
                pl.BlockSpec((H, tf), lambda m, f: (0, f)),      # w3^T
                pl.BlockSpec((tf, H), lambda m, f: (f, 0)),      # w2^T
            ],
            out_specs=pl.BlockSpec((tm, H), lambda m, f: (m, 0)),
            scratch_shapes=scratch,
        ),
        compiler_params=pltpu.CompilerParams(
            dimension_semantics=("parallel", "arbitrary"),
            vmem_limit_bytes=vmem_limit,
        ),
        cost_estimate=cost,
    )(x, w1t, w3t, w2t)

    if T_pad != T:
        out = out[:T]
    return out


def mixtral_mlp(hidden_states, w1t, w3t, w2t, *, plan=None):
    """Fused Mixtral expert MLP on pre-prepared (transposed) weights.

    hidden_states: (T, H); w1t, w3t: (H, F); w2t: (F, H).
    """
    T, H = hidden_states.shape
    F_dim = w2t.shape[0]
    assert w1t.shape == (H, F_dim) and w3t.shape == (H, F_dim)
    assert w2t.shape == (F_dim, H)
    if plan is None:
        plan = choose_plan(T, H, F_dim, hidden_states.dtype, w1t.dtype,
                           hidden_states.dtype)
    tm, tf, vmem_limit = plan
    return _mixtral_mlp_impl(hidden_states, w1t, w3t, w2t,
                             tm=tm, tf=tf, vmem_limit=vmem_limit)


def _reference(hidden_states, w1, w2, w3):
    xf = hidden_states.astype(jnp.float32)
    w1f, w2f, w3f = (w.astype(jnp.float32) for w in (w1, w2, w3))
    h = jax.nn.silu(xf @ w1f.T) * (xf @ w3f.T)
    return h @ w2f.T


if __name__ == "__main__":
    # Small config consistent with the module: hidden_size=128,
    # intermediate_size=256.
    H, F_dim = 128, 256

    key = jax.random.PRNGKey(0)
    kx, k1, k2, k3, kx2, kx3 = jax.random.split(key, 6)
    # nn.Linear(in, out, bias=False).weight has shape (out, in)
    w1 = jax.random.normal(k1, (F_dim, H), dtype=jnp.float32) * 0.02
    w2 = jax.random.normal(k2, (H, F_dim), dtype=jnp.float32) * 0.02
    w3 = jax.random.normal(k3, (F_dim, H), dtype=jnp.float32) * 0.02

    w1t, w3t, w2t = prepare_mixtral_weights(w1, w2, w3)   # load-time prep

    # --- case 1: aligned token count, fp32 (direct-accumulate kernel) ---
    T = 16
    x = jax.random.normal(kx, (T, H), dtype=jnp.float32)
    out = jax.block_until_ready(mixtral_mlp(x, w1t, w3t, w2t))
    ref = _reference(x, w1, w2, w3)
    assert out.shape == (T, H)
    assert jnp.allclose(out, ref, atol=1e-4, rtol=1e-4), \
        f"fp32 aligned max abs err {jnp.max(jnp.abs(out - ref))}"

    # --- case 2: ragged token count (exercises the padding path) ---
    T2 = 20
    x2 = jax.random.normal(kx2, (T2, H), dtype=jnp.float32)
    out2 = jax.block_until_ready(mixtral_mlp(x2, w1t, w3t, w2t))
    ref2 = _reference(x2, w1, w2, w3)
    assert out2.shape == (T2, H)
    assert jnp.allclose(out2, ref2, atol=1e-4, rtol=1e-4), \
        f"fp32 ragged max abs err {jnp.max(jnp.abs(out2 - ref2))}"

    # --- case 3: bf16 activations/weights (exercises the fp32-scratch kernel) ---
    T3 = 24
    x3 = jax.random.normal(kx3, (T3, H), dtype=jnp.float32).astype(jnp.bfloat16)
    w1b, w3b, w2b = (a.astype(jnp.bfloat16) for a in (w1t, w3t, w2t))
    out3 = jax.block_until_ready(mixtral_mlp(x3, w1b, w3b, w2b))
    ref3 = _reference(x3, w1.astype(jnp.bfloat16), w2.astype(jnp.bfloat16),
                      w3.astype(jnp.bfloat16))
    assert out3.shape == (T3, H)
    assert jnp.allclose(out3.astype(jnp.float32), ref3, atol=2e-3, rtol=5e-2), \
        f"bf16 max abs err {jnp.max(jnp.abs(out3.astype(jnp.float32) - ref3))}"

    print("KERNEL_OK")
</pallas_src>

<mosaic_0001>
module attributes {stable_mosaic.version = 11 : i64} {
  func.func @_mlp_kernel_fp32_out(%arg0: i32, %arg1: i32, %arg2: memref<16x128xf32, #tpu.memory_space<vmem>>, %arg3: memref<128x256xf32, #tpu.memory_space<vmem>>, %arg4: memref<128x256xf32, #tpu.memory_space<vmem>>, %arg5: memref<256x128xf32, #tpu.memory_space<vmem>>, %arg6: memref<16x128xf32, #tpu.memory_space<vmem>>) attributes {dimension_semantics = [#tpu.dimension_semantics<parallel>, #tpu.dimension_semantics<arbitrary>], iteration_bounds = array<i64: 1, 1>, scalar_prefetch = 0 : i64, scratch_operands = 0 : i64, tpu.core_type = #tpu.core_type<tc>, window_params = [{transform_indices = @transform_0, window_bounds = array<i64: 16, 128>}, {transform_indices = @transform_1, window_bounds = array<i64: 128, 256>}, {transform_indices = @transform_2, window_bounds = array<i64: 128, 256>}, {transform_indices = @transform_3, window_bounds = array<i64: 256, 128>}, {transform_indices = @transform_4, window_bounds = array<i64: 16, 128>}]} {
    %c0_i32 = arith.constant 0 : i32
    %0 = arith.cmpi eq, %arg1, %c0_i32 : i32
    %1 = arith.extui %0 : i1 to i32
    %c0_i32_0 = arith.constant 0 : i32
    %2 = arith.cmpi ne, %1, %c0_i32_0 : i32
    scf.if %2 {
      %cst_17 = arith.constant 0.000000e+00 : f32
      %21 = vector.broadcast %cst_17 : f32 to vector<16x128xf32>
      %c0_18 = arith.constant 0 : index
      %c0_19 = arith.constant 0 : index
      %22 = vector.load %arg6[%c0_18, %c0_19] : memref<16x128xf32, #tpu.memory_space<vmem>>, vector<16x128xf32>
      tpu.vector_store %arg6[%c0_18, %c0_19], %21 {strides = array<i32>} : memref<16x128xf32, #tpu.memory_space<vmem>>, vector<16x128xf32>,
    } else {
    }
    %c0 = arith.constant 0 : index
    %c0_1 = arith.constant 0 : index
    %3 = vector.load %arg2[%c0, %c0_1] : memref<16x128xf32, #tpu.memory_space<vmem>>, vector<16x128xf32>
    %c0_2 = arith.constant 0 : index
    %c0_3 = arith.constant 0 : index
    %4 = vector.load %arg3[%c0_2, %c0_3] : memref<128x256xf32, #tpu.memory_space<vmem>>, vector<128x256xf32>
    %cst = arith.constant dense<0.000000e+00> : vector<16x256xf32>
    %5 = tpu.matmul %3, %4, %cst {dimension_numbers = #tpu.dot_dimension_numbers<[1], [0], [0], [1], [0, 0, 1, 1], [], []>} : vector<16x128xf32>, vector<128x256xf32>, vector<16x256xf32> -> vector<16x256xf32>
    %c0_4 = arith.constant 0 : index
    %c0_5 = arith.constant 0 : index
    %6 = vector.load %arg2[%c0_4, %c0_5] : memref<16x128xf32, #tpu.memory_space<vmem>>, vector<16x128xf32>
    %c0_6 = arith.constant 0 : index
    %c0_7 = arith.constant 0 : index
    %7 = vector.load %arg4[%c0_6, %c0_7] : memref<128x256xf32, #tpu.memory_space<vmem>>, vector<128x256xf32>
    %cst_8 = arith.constant dense<0.000000e+00> : vector<16x256xf32>
    %8 = tpu.matmul %6, %7, %cst_8 {dimension_numbers = #tpu.dot_dimension_numbers<[1], [0], [0], [1], [0, 0, 1, 1], [], []>} : vector<16x128xf32>, vector<128x256xf32>, vector<16x256xf32> -> vector<16x256xf32>
    %9 = arith.negf %5 : vector<16x256xf32>
    %10 = math.exp %9 : vector<16x256xf32>
    %cst_9 = arith.constant 1.000000e+00 : f32
    %11 = vector.broadcast %cst_9 : f32 to vector<16x256xf32>
    %12 = arith.addf %11, %10 : vector<16x256xf32>
    %13 = arith.divf %11, %12 : vector<16x256xf32>
    %14 = arith.mulf %5, %13 : vector<16x256xf32>
    %15 = arith.mulf %14, %8 : vector<16x256xf32>
    %c0_10 = arith.constant 0 : index
    %c0_11 = arith.constant 0 : index
    %16 = vector.load %arg6[%c0_10, %c0_11] : memref<16x128xf32, #tpu.memory_space<vmem>>, vector<16x128xf32>
    %c0_12 = arith.constant 0 : index
    %c0_13 = arith.constant 0 : index
    %17 = vector.load %arg5[%c0_12, %c0_13] : memref<256x128xf32, #tpu.memory_space<vmem>>, vector<256x128xf32>
    %cst_14 = arith.constant dense<0.000000e+00> : vector<16x128xf32>
    %18 = tpu.matmul %15, %17, %cst_14 {dimension_numbers = #tpu.dot_dimension_numbers<[1], [0], [0], [1], [0, 0, 1, 1], [], []>} : vector<16x256xf32>, vector<256x128xf32>, vector<16x128xf32> -> vector<16x128xf32>
    %19 = arith.addf %16, %18 : vector<16x128xf32>
    %c0_15 = arith.constant 0 : index
    %c0_16 = arith.constant 0 : index
    %20 = vector.load %arg6[%c0_15, %c0_16] : memref<16x128xf32, #tpu.memory_space<vmem>>, vector<16x128xf32>
    tpu.vector_store %arg6[%c0_15, %c0_16], %19 {strides = array<i32>} : memref<16x128xf32, #tpu.memory_space<vmem>>, vector<16x128xf32>,
    return
  }
  func.func @transform_0(%arg0: i32, %arg1: i32) -> (i32, i32) {
    %c0_i32 = arith.constant 0 : i32
    %c0_i32_0 = arith.constant 0 : i32
    return %arg0, %c0_i32 : i32, i32
  }
  func.func @transform_1(%arg0: i32, %arg1: i32) -> (i32, i32) {
    %c0_i32 = arith.constant 0 : i32
    %c0_i32_0 = arith.constant 0 : i32
    return %c0_i32, %arg1 : i32, i32
  }
  func.func @transform_2(%arg0: i32, %arg1: i32) -> (i32, i32) {
    %c0_i32 = arith.constant 0 : i32
    %c0_i32_0 = arith.constant 0 : i32
    return %c0_i32, %arg1 : i32, i32
  }
  func.func @transform_3(%arg0: i32, %arg1: i32) -> (i32, i32) {
    %c0_i32 = arith.constant 0 : i32
    %c0_i32_0 = arith.constant 0 : i32
    return %arg1, %c0_i32 : i32, i32
  }
  func.func @transform_4(%arg0: i32, %arg1: i32) -> (i32, i32) {
    %c0_i32 = arith.constant 0 : i32
    %c0_i32_0 = arith.constant 0 : i32
    return %arg0, %c0_i32 : i32, i32
  }
}

</mosaic_0001>

<llo_original>
// kernel: _mixtral_mlp_impl.1
$region0: #{_mixtral_mlp_impl.1}
  #allocation0 [shape = 'u32[]', space=smem, size = 0x4, offset = 0x4, fixed_abs, tag = 'smem constant byte address 0x4 - core index']
  #allocation1 [shape = 'u32[144,128]{1,0:T(1,128)}', space=vmem, size = 0x12000, scoped, tag = 'internal scratch']
  %s0 = inlined_call_operand.hbm [shape: f32[16,128], index: 0, kind: input, shape index: {}]
  %s1 = inlined_call_operand.hbm [shape: f32[128,256], index: 1, kind: input, shape index: {}]
  %s2 = inlined_call_operand.hbm [shape: f32[128,256], index: 2, kind: input, shape index: {}]
  %s3 = inlined_call_operand.hbm [shape: f32[256,128], index: 3, kind: input, shape index: {}]
  %s4 = inlined_call_operand.hbm [shape: f32[16,128], index: 4, kind: output, shape index: {}]
  %s5 = sld [smem:[#allocation0]]
  $region46: #{_mixtral_mlp_impl.1} parent=0
    _
  %s7 = ssub.s32 1, %s5
  %s8 = scalar_select 0, %s7, %s5
  $region1: #{_mixtral_mlp_impl.1} parent=0
    #allocation2 [shape = 'u8[8192]{0}', space=vmem, size = 0x2000, scoped, tag = 'input window, operand 0, single buffered']
    #allocation3 [shape = 's32[1]{0}', space=sflag, size = 0x4, scoped, tag = 'scoped memory for _mixtral_mlp_impl.1']
    #allocation4 [shape = 's32[1]{0}', space=sflag, size = 0x4, scoped, tag = 'scoped memory for _mixtral_mlp_impl.1']
    #allocation5 [shape = 'u8[131072]{0}', space=vmem, size = 0x20000, scoped, tag = 'input window, operand 1, single buffered']
    #allocation6 [shape = 's32[1]{0}', space=sflag, size = 0x4, scoped, tag = 'scoped memory for _mixtral_mlp_impl.1']
    #allocation7 [shape = 'u8[131072]{0}', space=vmem, size = 0x20000, scoped, tag = 'input window, operand 2, single buffered']
    #allocation8 [shape = 'u8[131072]{0}', space=vmem, size = 0x20000, scoped, tag = 'input window, operand 3, single buffered']
    #allocation9 [shape = 's32[1]{0}', space=sflag, size = 0x4, scoped, tag = 'scoped memory for _mixtral_mlp_impl.1']
    #allocation10 [shape = 'u8[8192]{0}', space=vmem, size = 0x2000, scoped, tag = 'output window, operand 0, single buffered']
    %9 = vsyncpa [#allocation3], 0
    %10 = vsyncpa [#allocation6], 0
    %11 = vsyncpa [#allocation9], 0
    %12 = vsyncpa [#allocation4], 0
    // Predicated region
    $region2: #{_mixtral_mlp_impl.1} parent=1 // pred_check
      _
    $region3: #{_mixtral_mlp_impl.1} parent=1 // pred_check_branch
      %14 = sbr.rel (0) target = $region5
    $region4: #{_mixtral_mlp_impl.1} parent=1 // pred_region
      %s16 = ssub.s32 256, 256
      %17 = vsyncadd [#allocation3], %s16
      %s18 = sshll.u32 [#allocation2], 4
      %s19 = int_to_ptr.vmem [resolvable:$true] %s18
      %24 = dma.hbm_to_vmem [thread:$0]  %s0, 256, %s19, [#allocation3], 128, 128, 8
    $region5: #{_mixtral_mlp_impl.1} parent=1 // pred_fallthru
      _
    // Predicated region
    $region6: #{_mixtral_mlp_impl.1} parent=1 // pred_check
      _
    $region7: #{_mixtral_mlp_impl.1} parent=1 // pred_check_branch
      %26 = sbr.rel (0) target = $region9
    $region8: #{_mixtral_mlp_impl.1} parent=1 // pred_region
      %s28 = ssub.s32 4096, 4096
      %29 = vsyncadd [#allocation6], %s28
      %s30 = sshll.u32 [#allocation5], 4
      %s31 = int_to_ptr.vmem [resolvable:$true] %s30
      %36 = dma.hbm_to_vmem [thread:$0]  %s1, 4096, %s31, [#allocation6], 256, 256, 16
    $region9: #{_mixtral_mlp_impl.1} parent=1 // pred_fallthru
      _
    // Predicated region
    $region10: #{_mixtral_mlp_impl.1} parent=1 // pred_check
      _
    $region11: #{_mixtral_mlp_impl.1} parent=1 // pred_check_branch
      %38 = sbr.rel (0) target = $region13
    $region12: #{_mixtral_mlp_impl.1} parent=1 // pred_region
      %s40 = ssub.s32 4096, 4096
      %41 = vsyncadd [#allocation6], %s40
      %s42 = sshll.u32 [#allocation7], 4
      %s43 = int_to_ptr.vmem [resolvable:$true] %s42
      %48 = dma.hbm_to_vmem [thread:$0]  %s2, 4096, %s43, [#allocation6], 256, 256, 16
    $region13: #{_mixtral_mlp_impl.1} parent=1 // pred_fallthru
      _
    // Predicated region
    $region14: #{_mixtral_mlp_impl.1} parent=1 // pred_check
      _
    $region15: #{_mixtral_mlp_impl.1} parent=1 // pred_check_branch
      %50 = sbr.rel (0) target = $region17
    $region16: #{_mixtral_mlp_impl.1} parent=1 // pred_region
      %s52 = ssub.s32 4096, 4096
      %53 = vsyncadd [#allocation9], %s52
      %s54 = sshll.u32 [#allocation8], 4
      %s55 = int_to_ptr.vmem [resolvable:$true] %s54
      %60 = dma.hbm_to_vmem [thread:$0]  %s3, 4096, %s55, [#allocation9], 128, 128, 8
    $region17: #{_mixtral_mlp_impl.1} parent=1 // pred_fallthru
      _
    // Predicated region
    $region18: #{_mixtral_mlp_impl.1} parent=1 // pred_check
      _
    $region19: #{_mixtral_mlp_impl.1} parent=1 // pred_check_branch
      %62 = sbr.rel (0) target = $region21
    $region20: #{_mixtral_mlp_impl.1} parent=1 // pred_region
      %63 = dma.done [#allocation3], 256
    $region21: #{_mixtral_mlp_impl.1} parent=1 // pred_fallthru
      _
    // Predicated region
    $region22: #{_mixtral_mlp_impl.1} parent=1 // pred_check
      _
    $region23: #{_mixtral_mlp_impl.1} parent=1 // pred_check_branch
      %65 = sbr.rel (0) target = $region25
    $region24: #{_mixtral_mlp_impl.1} parent=1 // pred_region
      %66 = dma.done [#allocation6], 4096
    $region25: #{_mixtral_mlp_impl.1} parent=1 // pred_fallthru
      _
    // Predicated region
    $region26: #{_mixtral_mlp_impl.1} parent=1 // pred_check
      _
    $region27: #{_mixtral_mlp_impl.1} parent=1 // pred_check_branch
      %68 = sbr.rel (0) target = $region29
    $region28: #{_mixtral_mlp_impl.1} parent=1 // pred_region
      %69 = dma.done [#allocation6], 4096
    $region29: #{_mixtral_mlp_impl.1} parent=1 // pred_fallthru
      _
    // Predicated region
    $region30: #{_mixtral_mlp_impl.1} parent=1 // pred_check
      _
    $region31: #{_mixtral_mlp_impl.1} parent=1 // pred_check_branch
      %71 = sbr.rel (0) target = $region33
    $region32: #{_mixtral_mlp_impl.1} parent=1 // pred_region
      %72 = dma.done [#allocation9], 4096
    $region33: #{_mixtral_mlp_impl.1} parent=1 // pred_fallthru
      _
    %p73 = scmp.eq.s32.totalorder 0, 0
    // Predicated region
    $region34: #{_mixtral_mlp_impl.1} parent=1 // pred_check
      %p74 = pneg %p73
    $region35: #{_mixtral_mlp_impl.1} parent=1 // pred_check_branch
      %76 = sbr.rel (%p74) target = $region37
    $region36: #{_mixtral_mlp_impl.1} parent=1 // pred_region
      %77 = vst [vmem:[#allocation10] sm:$0xff] 0.0
      %78 = vst [vmem:[#allocation10 + $0x8] sm:$0xff] 0.0
    $region37: #{_mixtral_mlp_impl.1} parent=1 // pred_fallthru
      _
    %v79 = vld [vmem:[#allocation2] sm:$0xff]
    %v80 = vld [vmem:[#allocation2 + $0x8] sm:$0xff]
    %v81 = vld [vmem:[#allocation5] sm:$0xff]
    %v82 = vld [vmem:[#allocation5 + $0x8] sm:$0xff]
    %v83 = vld [vmem:[#allocation5 + $0x10] sm:$0xff]
    %v84 = vld [vmem:[#allocation5 + $0x18] sm:$0xff]
    %v85 = vld [vmem:[#allocation5 + $0x20] sm:$0xff]
    %v86 = vld [vmem:[#allocation5 + $0x28] sm:$0xff]
    %v87 = vld [vmem:[#allocation5 + $0x30] sm:$0xff]
    %v88 = vld [vmem:[#allocation5 + $0x38] sm:$0xff]
    %v89 = vld [vmem:[#allocation5 + $0x40] sm:$0xff]
    %v90 = vld [vmem:[#allocation5 + $0x48] sm:$0xff]
    %v91 = vld [vmem:[#allocation5 + $0x50] sm:$0xff]
    %v92 = vld [vmem:[#allocation5 + $0x58] sm:$0xff]
    %v93 = vld [vmem:[#allocation5 + $0x60] sm:$0xff]
    %v94 = vld [vmem:[#allocation5 + $0x68] sm:$0xff]
    %v95 = vld [vmem:[#allocation5 + $0x70] sm:$0xff]
    %v96 = vld [vmem:[#allocation5 + $0x78] sm:$0xff]
    %v97 = vld [vmem:[#allocation5 + $0x80] sm:$0xff]
    %v98 = vld [vmem:[#allocation5 + $0x88] sm:$0xff]
    %v99 = vld [vmem:[#allocation5 + $0x90] sm:$0xff]
    %v100 = vld [vmem:[#allocation5 + $0x98] sm:$0xff]
    %v101 = vld [vmem:[#allocation5 + $0xa0] sm:$0xff]
    %v102 = vld [vmem:[#allocation5 + $0xa8] sm:$0xff]
    %v103 = vld [vmem:[#allocation5 + $0xb0] sm:$0xff]
    %v104 = vld [vmem:[#allocation5 + $0xb8] sm:$0xff]
    %v105 = vld [vmem:[#allocation5 + $0xc0] sm:$0xff]
    %v106 = vld [vmem:[#allocation5 + $0xc8] sm:$0xff]
    %v107 = vld [vmem:[#allocation5 + $0xd0] sm:$0xff]
    %v108 = vld [vmem:[#allocation5 + $0xd8] sm:$0xff]
    %v109 = vld [vmem:[#allocation5 + $0xe0] sm:$0xff]
    %v110 = vld [vmem:[#allocation5 + $0xe8] sm:$0xff]
    %v111 = vld [vmem:[#allocation5 + $0xf0] sm:$0xff]
    %v112 = vld [vmem:[#allocation5 + $0xf8] sm:$0xff]
    %113 = vmatprep.subr.mxu0 %v112
    %114 = vmatpush1.msra.mxu0 %v111
    %115 = vmatprep.subr.mxu0 %v110
    %116 = vmatpush1.msra.mxu0 %v109
    %117 = vmatprep.subr.mxu0 %v108
    %118 = vmatpush1.msra.mxu0 %v107
    %119 = vmatprep.subr.mxu0 %v106
    %120 = vmatpush1.msra.mxu0 %v105
    %121 = vmatprep.subr.mxu0 %v104
    %122 = vmatpush1.msra.mxu0 %v103
    %123 = vmatprep.subr.mxu0 %v102
    %124 = vmatpush1.msra.mxu0 %v101
    %125 = vmatprep.subr.mxu0 %v100
    %126 = vmatpush1.msra.mxu0 %v99
    %127 = vmatprep.subr.mxu0 %v98
    %128 = vmatpush1.msra.mxu0 %v97
    %129 = vmatprep.subr.mxu0 %v96
    %130 = vmatpush1.msra.mxu0 %v95
    %131 = vmatprep.subr.mxu0 %v94
    %132 = vmatpush1.msra.mxu0 %v93
    %133 = vmatprep.subr.mxu0 %v92
    %134 = vmatpush1.msra.mxu0 %v91
    %135 = vmatprep.subr.mxu0 %v90
    %136 = vmatpush1.msra.mxu0 %v89
    %137 = vmatprep.subr.mxu0 %v88
    %138 = vmatpush1.msra.mxu0 %v87
    %139 = vmatprep.subr.mxu0 %v86
    %140 = vmatpush1.msra.mxu0 %v85
    %141 = vmatprep.subr.mxu0 %v84
    %142 = vmatpush1.msra.mxu0 %v83
    %143 = vmatprep.subr.mxu0 %v82
    %144 = vmatpush1.msra.mxu0 %v81
    %145 = vmatprep.subr.mxu0 0.0
    %146 = vmatpush2.msra.mxu0 0.0
    %147 = vmatprep.subr.mxu0 0.0
    %148 = vmatpush2.msra.mxu0 0.0
    %149 = vmatprep.subr.mxu0 0.0
    %150 = vmatpush2.msra.mxu0 0.0
    %151 = vmatprep.subr.mxu0 0.0
    %152 = vmatpush2.msra.mxu0 0.0
    %153 = vmatprep.subr.mxu0 0.0
    %154 = vmatpush2.msra.mxu0 0.0
    %155 = vmatprep.subr.mxu0 0.0
    %156 = vmatpush2.msra.mxu0 0.0
    %157 = vmatprep.subr.mxu0 0.0
    %158 = vmatpush2.msra.mxu0 0.0
    %159 = vmatprep.subr.mxu0 0.0
    %160 = vmatpush2.msra.mxu0 0.0
    %161 = vmatprep.subr.mxu0 0.0
    %162 = vmatpush2.msra.mxu0 0.0
    %163 = vmatprep.subr.mxu0 0.0
    %164 = vmatpush2.msra.mxu0 0.0
    %165 = vmatprep.subr.mxu0 0.0
    %166 = vmatpush2.msra.mxu0 0.0
    %167 = vmatprep.subr.mxu0 0.0
    %168 = vmatpush2.msra.mxu0 0.0
    %169 = vmatprep.subr.mxu0 0.0
    %170 = vmatpush2.msra.mxu0 0.0
    %171 = vmatprep.subr.mxu0 0.0
    %172 = vmatpush2.msra.mxu0 0.0
    %173 = vmatprep.subr.mxu0 0.0
    %174 = vmatpush2.msra.mxu0 0.0
    %175 = vmatprep.subr.mxu0 0.0
    %176 = vmatpush2.msra.mxu0 0.0
    %177 = vmatprep.mubr.f32.mxu0 0.0
    %178 = vmatmul.mubr.f32.gmra.mxu0 %v79
    %v179 = vpop.f32.mrf.mxu0
    %v180 = vadd.f32 0.0, %v179
    %v181 = vpop.f32.mrf.mxu0
    %v182 = vadd.f32 0.0, %v181
    %183 = vmatprep.mubr.f32.mxu0 0.0
    %184 = vmatmul.mubr.f32.gmra.mxu0 %v80
    %v185 = vpop.f32.mrf.mxu0
    %v186 = vadd.f32 0.0, %v185
    %v187 = vpop.f32.mrf.mxu0
    %v188 = vadd.f32 0.0, %v187
    %189 = vdwg.mxu0
    %v190 = vld [vmem:[#allocation7] sm:$0xff]
    %v191 = vld [vmem:[#allocation7 + $0x8] sm:$0xff]
    %v192 = vld [vmem:[#allocation7 + $0x10] sm:$0xff]
    %v193 = vld [vmem:[#allocation7 + $0x18] sm:$0xff]
    %v194 = vld [vmem:[#allocation7 + $0x20] sm:$0xff]
    %v195 = vld [vmem:[#allocation7 + $0x28] sm:$0xff]
    %v196 = vld [vmem:[#allocation7 + $0x30] sm:$0xff]
    %v197 = vld [vmem:[#allocation7 + $0x38] sm:$0xff]
    %v198 = vld [vmem:[#allocation7 + $0x40] sm:$0xff]
    %v199 = vld [vmem:[#allocation7 + $0x48] sm:$0xff]
    %v200 = vld [vmem:[#allocation7 + $0x50] sm:$0xff]
    %v201 = vld [vmem:[#allocation7 + $0x58] sm:$0xff]
    %v202 = vld [vmem:[#allocation7 + $0x60] sm:$0xff]
    %v203 = vld [vmem:[#allocation7 + $0x68] sm:$0xff]
    %v204 = vld [vmem:[#allocation7 + $0x70] sm:$0xff]
    %v205 = vld [vmem:[#allocation7 + $0x78] sm:$0xff]
    %v206 = vld [vmem:[#allocation7 + $0x80] sm:$0xff]
    %v207 = vld [vmem:[#allocation7 + $0x88] sm:$0xff]
    %v208 = vld [vmem:[#allocation7 + $0x90] sm:$0xff]
    %v209 = vld [vmem:[#allocation7 + $0x98] sm:$0xff]
    %v210 = vld [vmem:[#allocation7 + $0xa0] sm:$0xff]
    %v211 = vld [vmem:[#allocation7 + $0xa8] sm:$0xff]
    %v212 = vld [vmem:[#allocation7 + $0xb0] sm:$0xff]
    %v213 = vld [vmem:[#allocation7 + $0xb8] sm:$0xff]
    %v214 = vld [vmem:[#allocation7 + $0xc0] sm:$0xff]
    %v215 = vld [vmem:[#allocation7 + $0xc8] sm:$0xff]
    %v216 = vld [vmem:[#allocation7 + $0xd0] sm:$0xff]
    %v217 = vld [vmem:[#allocation7 + $0xd8] sm:$0xff]
    %v218 = vld [vmem:[#allocation7 + $0xe0] sm:$0xff]
    %v219 = vld [vmem:[#allocation7 + $0xe8] sm:$0xff]
    %v220 = vld [vmem:[#allocation7 + $0xf0] sm:$0xff]
    %v221 = vld [vmem:[#allocation7 + $0xf8] sm:$0xff]
    %222 = vmatprep.subr.mxu0 %v221
    %223 = vmatpush1.msra.mxu0 %v220
    %224 = vmatprep.subr.mxu0 %v219
    %225 = vmatpush1.msra.mxu0 %v218
    %226 = vmatprep.subr.mxu0 %v217
    %227 = vmatpush1.msra.mxu0 %v216
    %228 = vmatprep.subr.mxu0 %v215
    %229 = vmatpush1.msra.mxu0 %v214
    %230 = vmatprep.subr.mxu0 %v213
    %231 = vmatpush1.msra.mxu0 %v212
    %232 = vmatprep.subr.mxu0 %v211
    %233 = vmatpush1.msra.mxu0 %v210
    %234 = vmatprep.subr.mxu0 %v209
    %235 = vmatpush1.msra.mxu0 %v208
    %236 = vmatprep.subr.mxu0 %v207
    %237 = vmatpush1.msra.mxu0 %v206
    %238 = vmatprep.subr.mxu0 %v205
    %239 = vmatpush1.msra.mxu0 %v204
    %240 = vmatprep.subr.mxu0 %v203
    %241 = vmatpush1.msra.mxu0 %v202
    %242 = vmatprep.subr.mxu0 %v201
    %243 = vmatpush1.msra.mxu0 %v200
    %244 = vmatprep.subr.mxu0 %v199
    %245 = vmatpush1.msra.mxu0 %v198
    %246 = vmatprep.subr.mxu0 %v197
    %247 = vmatpush1.msra.mxu0 %v196
    %248 = vmatprep.subr.mxu0 %v195
    %249 = vmatpush1.msra.mxu0 %v194
    %250 = vmatprep.subr.mxu0 %v193
    %251 = vmatpush1.msra.mxu0 %v192
    %252 = vmatprep.subr.mxu0 %v191
    %253 = vmatpush1.msra.mxu0 %v190
    %254 = vmatprep.subr.mxu0 0.0
    %255 = vmatpush2.msra.mxu0 0.0
    %256 = vmatprep.subr.mxu0 0.0
    %257 = vmatpush2.msra.mxu0 0.0
    %258 = vmatprep.subr.mxu0 0.0
    %259 = vmatpush2.msra.mxu0 0.0
    %260 = vmatprep.subr.mxu0 0.0
    %261 = vmatpush2.msra.mxu0 0.0
    %262 = vmatprep.subr.mxu0 0.0
    %263 = vmatpush2.msra.mxu0 0.0
    %264 = vmatprep.subr.mxu0 0.0
    %265 = vmatpush2.msra.mxu0 0.0
    %266 = vmatprep.subr.mxu0 0.0
    %267 = vmatpush2.msra.mxu0 0.0
    %268 = vmatprep.subr.mxu0 0.0
    %269 = vmatpush2.msra.mxu0 0.0
    %270 = vmatprep.subr.mxu0 0.0
    %271 = vmatpush2.msra.mxu0 0.0
    %272 = vmatprep.subr.mxu0 0.0
    %273 = vmatpush2.msra.mxu0 0.0
    %274 = vmatprep.subr.mxu0 0.0
    %275 = vmatpush2.msra.mxu0 0.0
    %276 = vmatprep.subr.mxu0 0.0
    %277 = vmatpush2.msra.mxu0 0.0
    %278 = vmatprep.subr.mxu0 0.0
    %279 = vmatpush2.msra.mxu0 0.0
    %280 = vmatprep.subr.mxu0 0.0
    %281 = vmatpush2.msra.mxu0 0.0
    %282 = vmatprep.subr.mxu0 0.0
    %283 = vmatpush2.msra.mxu0 0.0
    %284 = vmatprep.subr.mxu0 0.0
    %285 = vmatpush2.msra.mxu0 0.0
    %286 = vmatprep.mubr.f32.mxu0 0.0
    %287 = vmatmul.mubr.f32.gmra.mxu0 %v79
    %v288 = vpop.f32.mrf.mxu0
    %v289 = vadd.f32 0.0, %v288
    %v290 = vpop.f32.mrf.mxu0
    %v291 = vadd.f32 0.0, %v290
    %292 = vmatprep.mubr.f32.mxu0 0.0
    %293 = vmatmul.mubr.f32.gmra.mxu0 %v80
    %v294 = vpop.f32.mrf.mxu0
    %v295 = vadd.f32 0.0, %v294
    %v296 = vpop.f32.mrf.mxu0
    %v297 = vadd.f32 0.0, %v296
    %298 = vdwg.mxu0
    %v299 = vxor.u32 %v180, 2147483648
    %v300 = vxor.u32 %v182, 2147483648
    %v301 = vxor.u32 %v186, 2147483648
    %v302 = vxor.u32 %v188, 2147483648
    %v303 = vmul.f32 %v299, 1.442695
    %v304 = vpow.pop %v303
    %v305 = vmul.f32 %v300, 1.442695
    %v306 = vpow.pop %v305
    %v307 = vmul.f32 %v301, 1.442695
    %v308 = vpow.pop %v307
    %v309 = vmul.f32 %v302, 1.442695
    %v310 = vpow.pop %v309
    %v311 = vadd.f32 %v304, 1.0
    %v312 = vadd.f32 %v306, 1.0
    %v313 = vadd.f32 %v308, 1.0
    %v314 = vadd.f32 %v310, 1.0
    %v315 = vrcp.pop %v311
    %v316 = vmul.f32 1.0, %v315
    %v317 = vrcp.pop %v312
    %v318 = vmul.f32 1.0, %v317
    %v319 = vrcp.pop %v313
    %v320 = vmul.f32 1.0, %v319
    %v321 = vrcp.pop %v314
    %v322 = vmul.f32 1.0, %v321
    %v323 = vmul.f32 %v180, %v316
    %v324 = vmul.f32 %v182, %v318
    %v325 = vmul.f32 %v186, %v320
    %v326 = vmul.f32 %v188, %v322
    %v327 = vmul.f32 %v323, %v289
    %v328 = vmul.f32 %v324, %v291
    %v329 = vmul.f32 %v325, %v295
    %v330 = vmul.f32 %v326, %v297
    %v331 = vld [vmem:[#allocation10] sm:$0xff]
    %v332 = vld [vmem:[#allocation10 + $0x8] sm:$0xff]
    %v333 = vld [vmem:[#allocation8] sm:$0xff]
    %v334 = vld [vmem:[#allocation8 + $0x8] sm:$0xff]
    %v335 = vld [vmem:[#allocation8 + $0x10] sm:$0xff]
    %v336 = vld [vmem:[#allocation8 + $0x18] sm:$0xff]
    %v337 = vld [vmem:[#allocation8 + $0x20] sm:$0xff]
    %v338 = vld [vmem:[#allocation8 + $0x28] sm:$0xff]
    %v339 = vld [vmem:[#allocation8 + $0x30] sm:$0xff]
    %v340 = vld [vmem:[#allocation8 + $0x38] sm:$0xff]
    %v341 = vld [vmem:[#allocation8 + $0x40] sm:$0xff]
    %v342 = vld [vmem:[#allocation8 + $0x48] sm:$0xff]
    %v343 = vld [vmem:[#allocation8 + $0x50] sm:$0xff]
    %v344 = vld [vmem:[#allocation8 + $0x58] sm:$0xff]
    %v345 = vld [vmem:[#allocation8 + $0x60] sm:$0xff]
    %v346 = vld [vmem:[#allocation8 + $0x68] sm:$0xff]
    %v347 = vld [vmem:[#allocation8 + $0x70] sm:$0xff]
    %v348 = vld [vmem:[#allocation8 + $0x78] sm:$0xff]
    %v349 = vld [vmem:[#allocation8 + $0x80] sm:$0xff]
    %v350 = vld [vmem:[#allocation8 + $0x88] sm:$0xff]
    %v351 = vld [vmem:[#allocation8 + $0x90] sm:$0xff]
    %v352 = vld [vmem:[#allocation8 + $0x98] sm:$0xff]
    %v353 = vld [vmem:[#allocation8 + $0xa0] sm:$0xff]
    %v354 = vld [vmem:[#allocation8 + $0xa8] sm:$0xff]
    %v355 = vld [vmem:[#allocation8 + $0xb0] sm:$0xff]
    %v356 = vld [vmem:[#allocation8 + $0xb8] sm:$0xff]
    %v357 = vld [vmem:[#allocation8 + $0xc0] sm:$0xff]
    %v358 = vld [vmem:[#allocation8 + $0xc8] sm:$0xff]
    %v359 = vld [vmem:[#allocation8 + $0xd0] sm:$0xff]
    %v360 = vld [vmem:[#allocation8 + $0xd8] sm:$0xff]
    %v361 = vld [vmem:[#allocation8 + $0xe0] sm:$0xff]
    %v362 = vld [vmem:[#allocation8 + $0xe8] sm:$0xff]
    %v363 = vld [vmem:[#allocation8 + $0xf0] sm:$0xff]
    %v364 = vld [vmem:[#allocation8 + $0xf8] sm:$0xff]
    %365 = vmatprep.subr.mxu0 0.0
    %366 = vmatpush1.msra.mxu0 %v348
    %367 = vmatprep.subr.mxu0 0.0
    %368 = vmatpush1.msra.mxu0 %v347
    %369 = vmatprep.subr.mxu0 0.0
    %370 = vmatpush1.msra.mxu0 %v346
    %371 = vmatprep.subr.mxu0 0.0
    %372 = vmatpush1.msra.mxu0 %v345
    %373 = vmatprep.subr.mxu0 0.0
    %374 = vmatpush1.msra.mxu0 %v344
    %375 = vmatprep.subr.mxu0 0.0
    %376 = vmatpush1.msra.mxu0 %v343
    %377 = vmatprep.subr.mxu0 0.0
    %378 = vmatpush1.msra.mxu0 %v342
    %379 = vmatprep.subr.mxu0 0.0
    %380 = vmatpush1.msra.mxu0 %v341
    %381 = vmatprep.subr.mxu0 0.0
    %382 = vmatpush1.msra.mxu0 %v340
    %383 = vmatprep.subr.mxu0 0.0
    %384 = vmatpush1.msra.mxu0 %v339
    %385 = vmatprep.subr.mxu0 0.0
    %386 = vmatpush1.msra.mxu0 %v338
    %387 = vmatprep.subr.mxu0 0.0
    %388 = vmatpush1.msra.mxu0 %v337
    %389 = vmatprep.subr.mxu0 0.0
    %390 = vmatpush1.msra.mxu0 %v336
    %391 = vmatprep.subr.mxu0 0.0
    %392 = vmatpush1.msra.mxu0 %v335
    %393 = vmatprep.subr.mxu0 0.0
    %394 = vmatpush1.msra.mxu0 %v334
    %395 = vmatprep.subr.mxu0 0.0
    %396 = vmatpush1.msra.mxu0 %v333
    %397 = vmatprep.subr.mxu0 0.0
    %398 = vmatpush2.msra.mxu0 %v364
    %399 = vmatprep.subr.mxu0 0.0
    %400 = vmatpush2.msra.mxu0 %v363
    %401 = vmatprep.subr.mxu0 0.0
    %402 = vmatpush2.msra.mxu0 %v362
    %403 = vmatprep.subr.mxu0 0.0
    %404 = vmatpush2.msra.mxu0 %v361
    %405 = vmatprep.subr.mxu0 0.0
    %406 = vmatpush2.msra.mxu0 %v360
    %407 = vmatprep.subr.mxu0 0.0
    %408 = vmatpush2.msra.mxu0 %v359
    %409 = vmatprep.subr.mxu0 0.0
    %410 = vmatpush2.msra.mxu0 %v358
    %411 = vmatprep.subr.mxu0 0.0
    %412 = vmatpush2.msra.mxu0 %v357
    %413 = vmatprep.subr.mxu0 0.0
    %414 = vmatpush2.msra.mxu0 %v356
    %415 = vmatprep.subr.mxu0 0.0
    %416 = vmatpush2.msra.mxu0 %v355
    %417 = vmatprep.subr.mxu0 0.0
    %418 = vmatpush2.msra.mxu0 %v354
    %419 = vmatprep.subr.mxu0 0.0
    %420 = vmatpush2.msra.mxu0 %v353
    %421 = vmatprep.subr.mxu0 0.0
    %422 = vmatpush2.msra.mxu0 %v352
    %423 = vmatprep.subr.mxu0 0.0
    %424 = vmatpush2.msra.mxu0 %v351
    %425 = vmatprep.subr.mxu0 0.0
    %426 = vmatpush2.msra.mxu0 %v350
    %427 = vmatprep.subr.mxu0 0.0
    %428 = vmatpush2.msra.mxu0 %v349
    %429 = vmatprep.mubr.f32.mxu0 %v328
    %430 = vmatmul.mubr.f32.gmra.mxu0 %v327
    %v431 = vpop.f32.mrf.mxu0
    %v432 = vadd.f32 0.0, %v431
    %v433 = vpop.f32.mrf.mxu0
    %434 = vmatprep.mubr.f32.mxu0 %v330
    %435 = vmatmul.mubr.f32.gmra.mxu0 %v329
    %v436 = vpop.f32.mrf.mxu0
    %v437 = vadd.f32 0.0, %v436
    %v438 = vpop.f32.mrf.mxu0
    %439 = vdwg.mxu0
    %v440 = vadd.f32 %v331, %v432
    %v441 = vadd.f32 %v332, %v437
    %442 = vst [vmem:[#allocation10] sm:$0xff] %v440
    %443 = vst [vmem:[#allocation10 + $0x8] sm:$0xff] %v441
    // Predicated region
    $region38: #{_mixtral_mlp_impl.1} parent=1 // pred_check
      _
    $region39: #{_mixtral_mlp_impl.1} parent=1 // pred_check_branch
      %445 = sbr.rel (0) target = $region41
    $region40: #{_mixtral_mlp_impl.1} parent=1 // pred_region
      %s447 = ssub.s32 256, 256
      %448 = vsyncadd [#allocation4], %s447
      %s449 = sshll.u32 [#allocation10], 4
      %s450 = int_to_ptr.vmem [resolvable:$true] %s449
      %455 = dma.vmem_to_hbm [thread:$0]  %s450, 256, %s4, [#allocation4], 128, 128, 8
    $region41: #{_mixtral_mlp_impl.1} parent=1 // pred_fallthru
      _
    // Predicated region
    $region42: #{_mixtral_mlp_impl.1} parent=1 // pred_check
      _
    $region43: #{_mixtral_mlp_impl.1} parent=1 // pred_check_branch
      %457 = sbr.rel (0) target = $region45
    $region44: #{_mixtral_mlp_impl.1} parent=1 // pred_region
      %458 = dma.done [#allocation4], 256
    $region45: #{_mixtral_mlp_impl.1} parent=1 // pred_fallthru
      _
    %459 = vsyncpa [#allocation3], 1
    %460 = vsyncpa [#allocation6], 1
    %461 = vsyncpa [#allocation9], 1
    %462 = vsyncpa [#allocation4], 1

</llo_original>
